<compile_context>
chip_gen: v7x
topology: tpu7x:2x2x1
jax: 0.10.0
libtpu: 0.0.40
codegen_flags: <defaults>
</compile_context>

<pallas_src>
import jax
import jax.numpy as jnp
from jax import lax
from jax.experimental import pallas as pl
from jax.experimental.pallas import tpu as pltpu
import numpy as np


def _make_kernel(bb, npos, feat):
    inv_npos = 1.0 / float(npos)

    def kernel(xs_ref, wc_ref, bc_ref, wfa_ref, wfm_ref, bfc_ref, o_ref,
               avg_ref, max_ref):
        # ---- 2x2 max pool: elementwise max over the 4 pre-gathered window
        #      slots (im2col is a gather, so this IS max_pool2d(x, 2)). -------
        pooled = jnp.maximum(jnp.maximum(xs_ref[0], xs_ref[1]),
                             jnp.maximum(xs_ref[2], xs_ref[3]))  # (bb*npos, K) bf16

        # ---- 3x3 "valid" conv: ONE im2col matmul on the MXU (bf16 inputs,
        #      f32 accumulation), then bias + ReLU. -------------------------
        conv = jnp.dot(pooled, wc_ref[...],
                       preferred_element_type=jnp.float32)       # (bb*npos, feat)
        conv = jnp.maximum(conv + bc_ref[...], 0.0)

        # ---- global average / max pooling over the npos positions of each
        #      image (static row segments -> small f32 scratch accumulators).
        for b in range(bb):
            seg = conv[b * npos:(b + 1) * npos, :]
            avg_ref[b:b + 1, :] = jnp.sum(seg, axis=0, keepdims=True) * inv_npos
            max_ref[b:b + 1, :] = jnp.max(seg, axis=0, keepdims=True)

        # TODO(synk): F.dropout is identity in eval mode; a training-mode
        # variant would use pltpu.prng_seed + pltpu.stateful_bernoulli.

        # ---- FC over cat(avg, max): fc weights pre-split per half so no
        #      lane-axis concatenation is needed in-kernel. ------------------
        logits = (jnp.dot(avg_ref[...].astype(jnp.bfloat16), wfa_ref[...],
                          preferred_element_type=jnp.float32)
                  + jnp.dot(max_ref[...].astype(jnp.bfloat16), wfm_ref[...],
                            preferred_element_type=jnp.float32)
                  + bfc_ref[...])                                 # (bb, nc)

        # ---- LogSoftmax(dim=-1), numerically stable. ------------------------
        m = jnp.max(logits, axis=-1, keepdims=True)
        z = logits - m
        lse = jnp.log(jnp.sum(jnp.exp(z), axis=-1, keepdims=True))
        o_ref[...] = (z - lse).astype(o_ref.dtype)

    return kernel


def global_classification_forward(x_nchw, params):
    """Pallas implementation of GlobalClassificationModel.forward (eval mode)."""
    conv_w, conv_b = params["conv_w"], params["conv_b"]   # HWIO (3,3,cin,feat), (feat,)
    fc_w, fc_b = params["fc_w"], params["fc_b"]           # (2*feat, nc), (nc,)

    B, cin, H, W = x_nchw.shape
    kh, kw, _, feat = conv_w.shape
    nc = fc_w.shape[1]
    assert H % 2 == 0 and W % 2 == 0, "floor-mode 2x2 pool: even spatial dims only"
    h2, w2 = H // 2, W // 2
    oh, ow = h2 - (kh - 1), w2 - (kw - 1)
    npos = oh * ow
    K = kh * kw * cin

    # ---------- layout-only prep in XLA (transposes / gathers, no reductions) -
    x = jnp.transpose(x_nchw, (0, 2, 3, 1)).astype(jnp.float32)   # NHWC
    # four 2x2 pool-window slots (strided slices), each (B, h2, w2, cin)
    slots = [x[:, dy::2, dx::2, :] for dy in (0, 1) for dx in (0, 1)]

    def im2col(s):
        # tap order (dy, dx) matches conv_w.reshape(kh*kw*cin, feat)
        taps = [s[:, dy:dy + oh, dx:dx + ow, :]
                for dy in range(kh) for dx in range(kw)]
        return jnp.stack(taps, axis=3).reshape(B * npos, K)       # (B*npos, K)

    # (4, B*npos, K): the kernel's slot-max of these == im2col(max_pool2d(x, 2))
    xslots = jnp.stack([im2col(s) for s in slots], axis=0).astype(jnp.bfloat16)

    wmat = conv_w.reshape(K, feat).astype(jnp.bfloat16)           # tap-major rows
    bconv = conv_b.reshape(1, feat).astype(jnp.float32)
    wf_avg = fc_w[:feat, :].astype(jnp.bfloat16)                  # multiplies avg_pool
    wf_max = fc_w[feat:, :].astype(jnp.bfloat16)                  # multiplies max_pool
    bfc = fc_b.reshape(1, nc).astype(jnp.float32)

    # Whole batch in one grid step (B=2 here).  For large B, tile the batch so
    # BB*npos is a multiple of 8 and >= 128 (v5e) / 256 (v6e, v7x) to fill an
    # MXU pass; VMEM footprint is tiny either way after the lane-dense layout.
    BB = B
    grid = (B // BB,)

    kernel = _make_kernel(BB, npos, feat)

    out = pl.pallas_call(
        kernel,
        out_shape=jax.ShapeDtypeStruct((B, nc), jnp.float32),
        grid_spec=pltpu.PrefetchScalarGridSpec(
            num_scalar_prefetch=0,
            grid=grid,
            in_specs=[
                pl.BlockSpec((4, BB * npos, K), lambda i: (0, i, 0)),
                pl.BlockSpec((K, feat), lambda i: (0, 0)),
                pl.BlockSpec((1, feat), lambda i: (0, 0)),
                pl.BlockSpec((feat, nc), lambda i: (0, 0)),
                pl.BlockSpec((feat, nc), lambda i: (0, 0)),
                pl.BlockSpec((1, nc), lambda i: (0, 0)),
            ],
            out_specs=pl.BlockSpec((BB, nc), lambda i: (i, 0)),
            scratch_shapes=[pltpu.VMEM((BB, feat), jnp.float32),
                            pltpu.VMEM((BB, feat), jnp.float32)],
        ),
        compiler_params=pltpu.CompilerParams(
            # batch-block axis is independent: v7x's 2 TensorCores can split it;
            # harmless on v5e/v6e (single TC) and with a single-step grid.
            dimension_semantics=("parallel",)),
    )(xslots, wmat, bconv, wf_avg, wf_max, bfc)
    return out


def reference_forward(x_nchw, params):
    """Pure-JAX reference replicating the PyTorch forward (eval mode, f32)."""
    x = jnp.transpose(x_nchw, (0, 2, 3, 1)).astype(jnp.float32)   # NHWC
    B, H, W, cin = x.shape
    xr = x.reshape(B, H // 2, 2, W // 2, 2, cin)
    pooled = xr.max(axis=4).max(axis=2)                           # max_pool2d(x, 2)
    out = lax.conv_general_dilated(
        pooled, params["conv_w"], window_strides=(1, 1), padding="VALID",
        dimension_numbers=("NHWC", "HWIO", "NHWC")) + params["conv_b"]
    out = jnp.maximum(out, 0.0)                                   # ReLU
    avg = out.mean(axis=(1, 2))
    mx = out.max(axis=(1, 2))
    featv = jnp.concatenate([avg, mx], axis=-1)                   # cat(avg, max)
    logits = featv @ params["fc_w"] + params["fc_b"]              # Linear
    return jax.nn.log_softmax(logits, axis=-1)                    # LogSoftmax


if __name__ == "__main__":
    # small shapes consistent with the module
    B, CIN, H, W = 2, 4, 16, 16
    FEAT, NUM_CLASSES = 32, 16

    key = jax.random.PRNGKey(0)
    k1, k2, k3, k4, k5 = jax.random.split(key, 5)
    params = {
        "conv_w": (jax.random.normal(k1, (3, 3, CIN, FEAT), jnp.float32) * 0.1),
        "conv_b": (jax.random.normal(k2, (FEAT,), jnp.float32) * 0.1),
        "fc_w":   (jax.random.normal(k3, (2 * FEAT, NUM_CLASSES), jnp.float32) * 0.1),
        "fc_b":   (jax.random.normal(k4, (NUM_CLASSES,), jnp.float32) * 0.1),
    }
    x = jax.random.normal(k5, (B, CIN, H, W), jnp.float32)        # NCHW, as PyTorch

    out = global_classification_forward(x, params)
    out = jax.block_until_ready(out)

    ref = jax.block_until_ready(reference_forward(x, params))
    np.testing.assert_allclose(np.asarray(out), np.asarray(ref),
                               rtol=2e-2, atol=2e-2)

    print("KERNEL_OK")
</pallas_src>

<mosaic_0001>
module attributes {stable_mosaic.version = 11 : i64} {
  func.func @kernel(%arg0: i32, %arg1: memref<4x72x36xbf16, #tpu.memory_space<vmem>>, %arg2: memref<36x32xbf16, #tpu.memory_space<vmem>>, %arg3: memref<1x32xf32, #tpu.memory_space<vmem>>, %arg4: memref<32x16xbf16, #tpu.memory_space<vmem>>, %arg5: memref<32x16xbf16, #tpu.memory_space<vmem>>, %arg6: memref<1x16xf32, #tpu.memory_space<vmem>>, %arg7: memref<2x16xf32, #tpu.memory_space<vmem>>, %arg8: memref<2x32xf32, #tpu.memory_space<vmem>>, %arg9: memref<2x32xf32, #tpu.memory_space<vmem>>) attributes {dimension_semantics = [#tpu.dimension_semantics<parallel>], iteration_bounds = array<i64: 1>, scalar_prefetch = 0 : i64, scratch_operands = 2 : i64, tpu.core_type = #tpu.core_type<tc>, window_params = [{transform_indices = @transform_0, window_bounds = array<i64: 4, 72, 36>}, {pipeline_mode = #tpu.pipeline_mode<synchronous>, transform_indices = @transform_1, window_bounds = array<i64: 36, 32>}, {pipeline_mode = #tpu.pipeline_mode<synchronous>, transform_indices = @transform_2, window_bounds = array<i64: 1, 32>}, {pipeline_mode = #tpu.pipeline_mode<synchronous>, transform_indices = @transform_3, window_bounds = array<i64: 32, 16>}, {pipeline_mode = #tpu.pipeline_mode<synchronous>, transform_indices = @transform_4, window_bounds = array<i64: 32, 16>}, {pipeline_mode = #tpu.pipeline_mode<synchronous>, transform_indices = @transform_5, window_bounds = array<i64: 1, 16>}, {transform_indices = @transform_6, window_bounds = array<i64: 2, 16>}]} {
    %c0 = arith.constant 0 : index
    %c0_0 = arith.constant 0 : index
    %c0_1 = arith.constant 0 : index
    %0 = vector.load %arg1[%c0, %c0_0, %c0_1] : memref<4x72x36xbf16, #tpu.memory_space<vmem>>, vector<1x72x36xbf16>
    %1 = vector.shape_cast %0 : vector<1x72x36xbf16> to vector<72x36xbf16>
    %c1 = arith.constant 1 : index
    %c0_2 = arith.constant 0 : index
    %c0_3 = arith.constant 0 : index
    %2 = vector.load %arg1[%c1, %c0_2, %c0_3] : memref<4x72x36xbf16, #tpu.memory_space<vmem>>, vector<1x72x36xbf16>
    %3 = vector.shape_cast %2 : vector<1x72x36xbf16> to vector<72x36xbf16>
    %4 = arith.maximumf %1, %3 : vector<72x36xbf16>
    %c2 = arith.constant 2 : index
    %c0_4 = arith.constant 0 : index
    %c0_5 = arith.constant 0 : index
    %5 = vector.load %arg1[%c2, %c0_4, %c0_5] : memref<4x72x36xbf16, #tpu.memory_space<vmem>>, vector<1x72x36xbf16>
    %6 = vector.shape_cast %5 : vector<1x72x36xbf16> to vector<72x36xbf16>
    %c3 = arith.constant 3 : index
    %c0_6 = arith.constant 0 : index
    %c0_7 = arith.constant 0 : index
    %7 = vector.load %arg1[%c3, %c0_6, %c0_7] : memref<4x72x36xbf16, #tpu.memory_space<vmem>>, vector<1x72x36xbf16>
    %8 = vector.shape_cast %7 : vector<1x72x36xbf16> to vector<72x36xbf16>
    %9 = arith.maximumf %6, %8 : vector<72x36xbf16>
    %10 = arith.maximumf %4, %9 : vector<72x36xbf16>
    %c0_8 = arith.constant 0 : index
    %c0_9 = arith.constant 0 : index
    %11 = vector.load %arg2[%c0_8, %c0_9] : memref<36x32xbf16, #tpu.memory_space<vmem>>, vector<36x32xbf16>
    %cst = arith.constant dense<0.000000e+00> : vector<72x32xf32>
    %12 = tpu.matmul %10, %11, %cst {dimension_numbers = #tpu.dot_dimension_numbers<[1], [0], [0], [1], [0, 0, 1, 1], [], []>} : vector<72x36xbf16>, vector<36x32xbf16>, vector<72x32xf32> -> vector<72x32xf32>
    %c0_10 = arith.constant 0 : index
    %c0_11 = arith.constant 0 : index
    %13 = vector.load %arg3[%c0_10, %c0_11] : memref<1x32xf32, #tpu.memory_space<vmem>>, vector<1x32xf32>
    %14 = vector.broadcast %13 : vector<1x32xf32> to vector<72x32xf32>
    %15 = arith.addf %12, %14 : vector<72x32xf32>
    %cst_12 = arith.constant 0.000000e+00 : f32
    %16 = vector.broadcast %cst_12 : f32 to vector<72x32xf32>
    %17 = arith.maximumf %15, %16 : vector<72x32xf32>
    %18 = vector.extract_strided_slice %17 {offsets = [0, 0], sizes = [36, 32], strides = [1, 1]} : vector<72x32xf32> to vector<36x32xf32>
    %cst_13 = arith.constant dense<0.000000e+00> : vector<32xf32>
    %19 = vector.multi_reduction <add>, %18, %cst_13 [0] : vector<36x32xf32> to vector<32xf32>
    %20 = vector.shape_cast %19 : vector<32xf32> to vector<1x32xf32>
    %cst_14 = arith.constant 0.027777778 : f32
    %21 = vector.broadcast %cst_14 : f32 to vector<1x32xf32>
    %22 = arith.mulf %20, %21 : vector<1x32xf32>
    %c0_15 = arith.constant 0 : index
    %c0_16 = arith.constant 0 : index
    %23 = vector.load %arg8[%c0_15, %c0_16] : memref<2x32xf32, #tpu.memory_space<vmem>>, vector<1x32xf32>
    tpu.vector_store %arg8[%c0_15, %c0_16], %22 {strides = array<i32>} : memref<2x32xf32, #tpu.memory_space<vmem>>, vector<1x32xf32>,
    %cst_17 = arith.constant dense<0xFF800000> : vector<32xf32>
    %24 = vector.multi_reduction <maximumf>, %18, %cst_17 [0] : vector<36x32xf32> to vector<32xf32>
    %25 = vector.shape_cast %24 : vector<32xf32> to vector<1x32xf32>
    %c0_18 = arith.constant 0 : index
    %c0_19 = arith.constant 0 : index
    %26 = vector.load %arg9[%c0_18, %c0_19] : memref<2x32xf32, #tpu.memory_space<vmem>>, vector<1x32xf32>
    tpu.vector_store %arg9[%c0_18, %c0_19], %25 {strides = array<i32>} : memref<2x32xf32, #tpu.memory_space<vmem>>, vector<1x32xf32>,
    %27 = vector.extract_strided_slice %17 {offsets = [36, 0], sizes = [36, 32], strides = [1, 1]} : vector<72x32xf32> to vector<36x32xf32>
    %cst_20 = arith.constant dense<0.000000e+00> : vector<32xf32>
    %28 = vector.multi_reduction <add>, %27, %cst_20 [0] : vector<36x32xf32> to vector<32xf32>
    %29 = vector.shape_cast %28 : vector<32xf32> to vector<1x32xf32>
    %cst_21 = arith.constant 0.027777778 : f32
    %30 = vector.broadcast %cst_21 : f32 to vector<1x32xf32>
    %31 = arith.mulf %29, %30 : vector<1x32xf32>
    %c1_22 = arith.constant 1 : index
    %c0_23 = arith.constant 0 : index
    %32 = vector.load %arg8[%c1_22, %c0_23] : memref<2x32xf32, #tpu.memory_space<vmem>>, vector<1x32xf32>
    tpu.vector_store %arg8[%c1_22, %c0_23], %31 {strides = array<i32>} : memref<2x32xf32, #tpu.memory_space<vmem>>, vector<1x32xf32>,
    %cst_24 = arith.constant dense<0xFF800000> : vector<32xf32>
    %33 = vector.multi_reduction <maximumf>, %27, %cst_24 [0] : vector<36x32xf32> to vector<32xf32>
    %34 = vector.shape_cast %33 : vector<32xf32> to vector<1x32xf32>
    %c1_25 = arith.constant 1 : index
    %c0_26 = arith.constant 0 : index
    %35 = vector.load %arg9[%c1_25, %c0_26] : memref<2x32xf32, #tpu.memory_space<vmem>>, vector<1x32xf32>
    tpu.vector_store %arg9[%c1_25, %c0_26], %34 {strides = array<i32>} : memref<2x32xf32, #tpu.memory_space<vmem>>, vector<1x32xf32>,
    %c0_27 = arith.constant 0 : index
    %c0_28 = arith.constant 0 : index
    %36 = vector.load %arg8[%c0_27, %c0_28] : memref<2x32xf32, #tpu.memory_space<vmem>>, vector<2x32xf32>
    %37 = arith.truncf %36 : vector<2x32xf32> to vector<2x32xbf16>
    %c0_29 = arith.constant 0 : index
    %c0_30 = arith.constant 0 : index
    %38 = vector.load %arg4[%c0_29, %c0_30] : memref<32x16xbf16, #tpu.memory_space<vmem>>, vector<32x16xbf16>
    %cst_31 = arith.constant dense<0.000000e+00> : vector<2x16xf32>
    %39 = tpu.matmul %37, %38, %cst_31 {dimension_numbers = #tpu.dot_dimension_numbers<[1], [0], [0], [1], [0, 0, 1, 1], [], []>} : vector<2x32xbf16>, vector<32x16xbf16>, vector<2x16xf32> -> vector<2x16xf32>
    %c0_32 = arith.constant 0 : index
    %c0_33 = arith.constant 0 : index
    %40 = vector.load %arg9[%c0_32, %c0_33] : memref<2x32xf32, #tpu.memory_space<vmem>>, vector<2x32xf32>
    %41 = arith.truncf %40 : vector<2x32xf32> to vector<2x32xbf16>
    %c0_34 = arith.constant 0 : index
    %c0_35 = arith.constant 0 : index
    %42 = vector.load %arg5[%c0_34, %c0_35] : memref<32x16xbf16, #tpu.memory_space<vmem>>, vector<32x16xbf16>
    %cst_36 = arith.constant dense<0.000000e+00> : vector<2x16xf32>
    %43 = tpu.matmul %41, %42, %cst_36 {dimension_numbers = #tpu.dot_dimension_numbers<[1], [0], [0], [1], [0, 0, 1, 1], [], []>} : vector<2x32xbf16>, vector<32x16xbf16>, vector<2x16xf32> -> vector<2x16xf32>
    %44 = arith.addf %39, %43 : vector<2x16xf32>
    %c0_37 = arith.constant 0 : index
    %c0_38 = arith.constant 0 : index
    %45 = vector.load %arg6[%c0_37, %c0_38] : memref<1x16xf32, #tpu.memory_space<vmem>>, vector<1x16xf32>
    %46 = vector.broadcast %45 : vector<1x16xf32> to vector<2x16xf32>
    %47 = arith.addf %44, %46 : vector<2x16xf32>
    %cst_39 = arith.constant dense<0xFF800000> : vector<2xf32>
    %48 = vector.multi_reduction <maximumf>, %47, %cst_39 [1] : vector<2x16xf32> to vector<2xf32>
    %49 = vector.shape_cast %48 : vector<2xf32> to vector<2x1xf32>
    %50 = vector.broadcast %49 : vector<2x1xf32> to vector<2x16xf32>
    %51 = arith.subf %47, %50 : vector<2x16xf32>
    %52 = math.exp %51 : vector<2x16xf32>
    %cst_40 = arith.constant dense<0.000000e+00> : vector<2xf32>
    %53 = vector.multi_reduction <add>, %52, %cst_40 [1] : vector<2x16xf32> to vector<2xf32>
    %54 = vector.shape_cast %53 : vector<2xf32> to vector<2x1xf32>
    %55 = math.log %54 : vector<2x1xf32>
    %56 = vector.broadcast %55 : vector<2x1xf32> to vector<2x16xf32>
    %57 = arith.subf %51, %56 : vector<2x16xf32>
    %c0_41 = arith.constant 0 : index
    %c0_42 = arith.constant 0 : index
    %58 = vector.load %arg7[%c0_41, %c0_42] : memref<2x16xf32, #tpu.memory_space<vmem>>, vector<2x16xf32>
    tpu.vector_store %arg7[%c0_41, %c0_42], %57 {strides = array<i32>} : memref<2x16xf32, #tpu.memory_space<vmem>>, vector<2x16xf32>,
    return
  }
  func.func @transform_0(%arg0: i32) -> (i32, i32, i32) {
    %c0_i32 = arith.constant 0 : i32
    %c0_i32_0 = arith.constant 0 : i32
    %c0_i32_1 = arith.constant 0 : i32
    return %c0_i32, %arg0, %c0_i32_0 : i32, i32, i32
  }
  func.func @transform_1(%arg0: i32) -> (i32, i32) {
    %c0_i32 = arith.constant 0 : i32
    %c0_i32_0 = arith.constant 0 : i32
    %c0_i32_1 = arith.constant 0 : i32
    return %c0_i32, %c0_i32_0 : i32, i32
  }
  func.func @transform_2(%arg0: i32) -> (i32, i32) {
    %c0_i32 = arith.constant 0 : i32
    %c0_i32_0 = arith.constant 0 : i32
    %c0_i32_1 = arith.constant 0 : i32
    return %c0_i32, %c0_i32_0 : i32, i32
  }
  func.func @transform_3(%arg0: i32) -> (i32, i32) {
    %c0_i32 = arith.constant 0 : i32
    %c0_i32_0 = arith.constant 0 : i32
    %c0_i32_1 = arith.constant 0 : i32
    return %c0_i32, %c0_i32_0 : i32, i32
  }
  func.func @transform_4(%arg0: i32) -> (i32, i32) {
    %c0_i32 = arith.constant 0 : i32
    %c0_i32_0 = arith.constant 0 : i32
    %c0_i32_1 = arith.constant 0 : i32
    return %c0_i32, %c0_i32_0 : i32, i32
  }
  func.func @transform_5(%arg0: i32) -> (i32, i32) {
    %c0_i32 = arith.constant 0 : i32
    %c0_i32_0 = arith.constant 0 : i32
    %c0_i32_1 = arith.constant 0 : i32
    return %c0_i32, %c0_i32_0 : i32, i32
  }
  func.func @transform_6(%arg0: i32) -> (i32, i32) {
    %c0_i32 = arith.constant 0 : i32
    %c0_i32_0 = arith.constant 0 : i32
    return %arg0, %c0_i32 : i32, i32
  }
}

</mosaic_0001>

<llo_original>
// kernel: tpu_custom_call.1
$region0: #{tpu_custom_call.1}
  #allocation0 [shape = 'u32[]', space=smem, size = 0x4, offset = 0x4, fixed_abs, tag = 'smem constant byte address 0x4 - core index']
  #allocation1 [shape = 'u32[144,128]{1,0:T(1,128)}', space=vmem, size = 0x12000, scoped, tag = 'internal scratch']
  #allocation2 [shape = 'f32[2,32]{1,0:T(2,128)}', space=vmem, size = 0x400, scoped, tag = 'scratch operand']
  #allocation3 [shape = 'f32[2,32]{1,0:T(2,128)}', space=vmem, size = 0x400, scoped, tag = 'scratch operand']
  %s0 = inlined_call_operand.vmem [shape: bf16[4,72,36], index: 0, kind: input, shape index: {}]
  %s1 = inlined_call_operand.vmem [shape: bf16[36,32], index: 1, kind: input, shape index: {}]
  %s2 = inlined_call_operand.vmem [shape: f32[1,32], index: 2, kind: input, shape index: {}]
  %s3 = inlined_call_operand.vmem [shape: bf16[32,16], index: 3, kind: input, shape index: {}]
  %s4 = inlined_call_operand.vmem [shape: bf16[32,16], index: 4, kind: input, shape index: {}]
  %s5 = inlined_call_operand.vmem [shape: f32[1,16], index: 5, kind: input, shape index: {}]
  %s6 = inlined_call_operand.hbm [shape: f32[2,16], index: 6, kind: output, shape index: {}]
  %s7 = sld [smem:[#allocation0]]
  $region34: #{tpu_custom_call.1} parent=0
    _
  %s9 = ssub.s32 1, %s7
  %s10 = scalar_select 0, %s9, %s7
  $region1: #{tpu_custom_call.1} parent=0
    #allocation4 [shape = 'u8[1024]{0}', space=vmem, size = 0x400, scoped, tag = 'output window, operand 0, single buffered']
    #allocation5 [shape = 's32[1]{0}', space=sflag, size = 0x4, scoped, tag = 'scoped memory for tpu_custom_call.1']
    %11 = vsyncpa [#allocation5], 0
    // Predicated region
    $region2: #{tpu_custom_call.1} parent=1 // pred_check
      _
    $region3: #{tpu_custom_call.1} parent=1 // pred_check_branch
      %13 = sbr.rel (0) target = $region5
    $region4: #{tpu_custom_call.1} parent=1 // pred_region
      _
    $region5: #{tpu_custom_call.1} parent=1 // pred_fallthru
      _
    // Predicated region
    $region6: #{tpu_custom_call.1} parent=1 // pred_check
      _
    $region7: #{tpu_custom_call.1} parent=1 // pred_check_branch
      %15 = sbr.rel (0) target = $region9
    $region8: #{tpu_custom_call.1} parent=1 // pred_region
      _
    $region9: #{tpu_custom_call.1} parent=1 // pred_fallthru
      _
    // Predicated region
    $region10: #{tpu_custom_call.1} parent=1 // pred_check
      _
    $region11: #{tpu_custom_call.1} parent=1 // pred_check_branch
      %17 = sbr.rel (0) target = $region13
    $region12: #{tpu_custom_call.1} parent=1 // pred_region
      _
    $region13: #{tpu_custom_call.1} parent=1 // pred_fallthru
      _
    // Predicated region
    $region14: #{tpu_custom_call.1} parent=1 // pred_check
      _
    $region15: #{tpu_custom_call.1} parent=1 // pred_check_branch
      %19 = sbr.rel (0) target = $region17
    $region16: #{tpu_custom_call.1} parent=1 // pred_region
      _
    $region17: #{tpu_custom_call.1} parent=1 // pred_fallthru
      _
    // Predicated region
    $region18: #{tpu_custom_call.1} parent=1 // pred_check
      _
    $region19: #{tpu_custom_call.1} parent=1 // pred_check_branch
      %21 = sbr.rel (0) target = $region21
    $region20: #{tpu_custom_call.1} parent=1 // pred_region
      _
    $region21: #{tpu_custom_call.1} parent=1 // pred_fallthru
      _
    // Predicated region
    $region22: #{tpu_custom_call.1} parent=1 // pred_check
      _
    $region23: #{tpu_custom_call.1} parent=1 // pred_check_branch
      %23 = sbr.rel (0) target = $region25
    $region24: #{tpu_custom_call.1} parent=1 // pred_region
      _
    $region25: #{tpu_custom_call.1} parent=1 // pred_fallthru
      _
    %v25 = vld [vmem:[%s0] sm:$0xf]
    %v26 = vld [vmem:[%s0 + $0x4] sm:$0xf]
    %v27 = vld [vmem:[%s0 + $0x8] sm:$0xf]
    %v28 = vld [vmem:[%s0 + $0xc] sm:$0xf]
    %v29 = vld [vmem:[%s0 + $0x10] sm:$0xf]
    %v30 = vld [vmem:[%s0 + $0x14] sm:$0xf]
    %v31 = vld [vmem:[%s0 + $0x18] sm:$0xf]
    %v32 = vld [vmem:[%s0 + $0x1c] sm:$0xf]
    %v33 = vld [vmem:[%s0 + $0x20] sm:$0xf]
    %s34 = scalar_lea.vmem %s0, 36
    %v35 = vld [vmem:[%s34] sm:$0xf]
    %v36 = vld [vmem:[%s34 + $0x4] sm:$0xf]
    %v37 = vld [vmem:[%s34 + $0x8] sm:$0xf]
    %v38 = vld [vmem:[%s34 + $0xc] sm:$0xf]
    %v39 = vld [vmem:[%s34 + $0x10] sm:$0xf]
    %v40 = vld [vmem:[%s34 + $0x14] sm:$0xf]
    %v41 = vld [vmem:[%s34 + $0x18] sm:$0xf]
    %v42 = vld [vmem:[%s34 + $0x1c] sm:$0xf]
    %v43 = vld [vmem:[%s34 + $0x20] sm:$0xf]
    %v44 = vmax.bf16 %v25, %v35
    %v45 = vmax.bf16 %v26, %v36
    %v46 = vmax.bf16 %v27, %v37
    %v47 = vmax.bf16 %v28, %v38
    %v48 = vmax.bf16 %v29, %v39
    %v49 = vmax.bf16 %v30, %v40
    %v50 = vmax.bf16 %v31, %v41
    %v51 = vmax.bf16 %v32, %v42
    %v52 = vmax.bf16 %v33, %v43
    %s53 = scalar_lea.vmem %s0, 72
    %v54 = vld [vmem:[%s53] sm:$0xf]
    %v55 = vld [vmem:[%s53 + $0x4] sm:$0xf]
    %v56 = vld [vmem:[%s53 + $0x8] sm:$0xf]
    %v57 = vld [vmem:[%s53 + $0xc] sm:$0xf]
    %v58 = vld [vmem:[%s53 + $0x10] sm:$0xf]
    %v59 = vld [vmem:[%s53 + $0x14] sm:$0xf]
    %v60 = vld [vmem:[%s53 + $0x18] sm:$0xf]
    %v61 = vld [vmem:[%s53 + $0x1c] sm:$0xf]
    %v62 = vld [vmem:[%s53 + $0x20] sm:$0xf]
    %s63 = scalar_lea.vmem %s0, 108
    %v64 = vld [vmem:[%s63] sm:$0xf]
    %v65 = vld [vmem:[%s63 + $0x4] sm:$0xf]
    %v66 = vld [vmem:[%s63 + $0x8] sm:$0xf]
    %v67 = vld [vmem:[%s63 + $0xc] sm:$0xf]
    %v68 = vld [vmem:[%s63 + $0x10] sm:$0xf]
    %v69 = vld [vmem:[%s63 + $0x14] sm:$0xf]
    %v70 = vld [vmem:[%s63 + $0x18] sm:$0xf]
    %v71 = vld [vmem:[%s63 + $0x1c] sm:$0xf]
    %v72 = vld [vmem:[%s63 + $0x20] sm:$0xf]
    %v73 = vmax.bf16 %v54, %v64
    %v74 = vmax.bf16 %v55, %v65
    %v75 = vmax.bf16 %v56, %v66
    %v76 = vmax.bf16 %v57, %v67
    %v77 = vmax.bf16 %v58, %v68
    %v78 = vmax.bf16 %v59, %v69
    %v79 = vmax.bf16 %v60, %v70
    %v80 = vmax.bf16 %v61, %v71
    %v81 = vmax.bf16 %v62, %v72
    %v82 = vmax.bf16 %v44, %v73
    %v83 = vmax.bf16 %v45, %v74
    %v84 = vmax.bf16 %v46, %v75
    %v85 = vmax.bf16 %v47, %v76
    %v86 = vmax.bf16 %v48, %v77
    %v87 = vmax.bf16 %v49, %v78
    %v88 = vmax.bf16 %v50, %v79
    %v89 = vmax.bf16 %v51, %v80
    %v90 = vmax.bf16 %v52, %v81
    %v91 = vld [vmem:[%s1] sm:$0xf]
    %v92 = vld [vmem:[%s1 + $0x4] sm:$0xf]
    %v93 = vld [vmem:[%s1 + $0x8] sm:$0xf]
    %v94 = vld [vmem:[%s1 + $0xc] sm:$0xf]
    %v95 = vld [vmem:[%s1 + $0x10] sm:$0x3]
    %v96 = vld [vmem:[%s2] sm:$0x1]
    %v98 = vlaneseq
    %v99 = vshrl.u32 %v98, 7
    %v100 = vsub.s32 0, %v99
    %v101 = vrot.slane %v96, %v100
    %v112 = vunpack.c.l.b16 %v82
    %v113 = vunpack.c.l.b16 %v83
    %v114 = vunpack.c.l.b16 %v84
    %v115 = vunpack.c.l.b16 %v85
    %v116 = vunpack.c.l.b16 %v86
    %v117 = vunpack.c.l.b16 %v87
    %v118 = vunpack.c.l.b16 %v88
    %v119 = vunpack.c.l.b16 %v89
    %v120 = vunpack.c.l.b16 %v90
    %v121 = vpack.c.b16 %v113, %v112
    %v122 = vpack.c.b16 %v115, %v114
    %v123 = vpack.c.b16 %v117, %v116
    %v124 = vpack.c.b16 %v119, %v118
    %v125 = vpack.c.b16 %v120, %v120
    %v131 = vunpack.c.l.b16 %v91
    %v132 = vunpack.c.l.b16 %v92
    %v133 = vunpack.c.l.b16 %v93
    %v134 = vunpack.c.l.b16 %v94
    %v135 = vunpack.c.l.b16 %v95
    %v136 = vpack.c.b16 %v132, %v131
    %v137 = vpack.c.b16 %v134, %v133
    %v138 = vpack.c.b16 %v135, %v135
    %vm141 = vcmask 293888
    %v143 = vsel %vm141, %v121, 0
    %v146 = vsel %vm141, %v122, 0
    %v149 = vsel %vm141, %v123, 0
    %v152 = vsel %vm141, %v124, 0
    %v155 = vsel %vm141, %v125, 0
    %vm157 = vcmask 1041408
    %v159 = vsel %vm157, %v138, 0
    %161 = vmatprep.subr.bf16.mxu0 0
    %162 = vmatpush1.bf16.msra.mxu0 %v136
    %163 = vmatprep.subr.bf16.mxu0 0
    %164 = vmatpush1.bf16.msra.mxu0 %v137
    %165 = vmatprep.subr.bf16.mxu0 0
    %166 = vmatpush1.bf16.msra.mxu0 %v159
    %167 = vmatprep.subr.bf16.mxu0 0
    %168 = vmatpush1.bf16.msra.mxu0 0
    %169 = vmatprep.subr.bf16.mxu0 0
    %170 = vmatpush1.bf16.msra.mxu0 0
    %171 = vmatprep.subr.bf16.mxu0 0
    %172 = vmatpush1.bf16.msra.mxu0 0
    %173 = vmatprep.subr.bf16.mxu0 0
    %174 = vmatpush1.bf16.msra.mxu0 0
    %175 = vmatprep.subr.bf16.mxu0 0
    %176 = vmatpush1.bf16.msra.mxu0 0
    %177 = vmatprep.subr.bf16.mxu0 0
    %178 = vmatpush1.bf16.msra.mxu0 0
    %179 = vmatprep.subr.bf16.mxu0 0
    %180 = vmatpush1.bf16.msra.mxu0 0
    %181 = vmatprep.subr.bf16.mxu0 0
    %182 = vmatpush1.bf16.msra.mxu0 0
    %183 = vmatprep.subr.bf16.mxu0 0
    %184 = vmatpush1.bf16.msra.mxu0 0
    %185 = vmatprep.subr.bf16.mxu0 0
    %186 = vmatpush1.bf16.msra.mxu0 0
    %187 = vmatprep.subr.bf16.mxu0 0
    %188 = vmatpush1.bf16.msra.mxu0 0
    %189 = vmatprep.subr.bf16.mxu0 0
    %190 = vmatpush1.bf16.msra.mxu0 0
    %191 = vmatprep.subr.bf16.mxu0 0
    %192 = vmatpush1.bf16.msra.mxu0 0
    %193 = vmatprep.mubr.bf16.mxu0 0
    %194 = vmatmul.mubr.bf16.gmra.mrb[0].mxu0 %v143
    %v195 = vpop.f32.mrb[0].mxu0
    %v196 = vadd.f32 %v101, %v195
    %v197 = vpop.f32.mrb[0].mxu0
    %v198 = vpop.f32.mrb[0].mxu0
    %v199 = vadd.f32 %v101, %v198
    %v200 = vpop.f32.mrb[0].mxu0
    %201 = vmatprep.mubr.bf16.mxu0 0
    %202 = vmatmul.mubr.bf16.gmra.mrb[0].mxu0 %v146
    %v203 = vpop.f32.mrb[0].mxu0
    %v204 = vadd.f32 %v101, %v203
    %v205 = vpop.f32.mrb[0].mxu0
    %v206 = vpop.f32.mrb[0].mxu0
    %v207 = vadd.f32 %v101, %v206
    %v208 = vpop.f32.mrb[0].mxu0
    %209 = vmatprep.mubr.bf16.mxu0 0
    %210 = vmatmul.mubr.bf16.gmra.mrb[0].mxu0 %v149
    %v211 = vpop.f32.mrb[0].mxu0
    %v212 = vadd.f32 %v101, %v211
    %v213 = vpop.f32.mrb[0].mxu0
    %v214 = vpop.f32.mrb[0].mxu0
    %v215 = vadd.f32 %v101, %v214
    %v216 = vpop.f32.mrb[0].mxu0
    %217 = vmatprep.mubr.bf16.mxu0 0
    %218 = vmatmul.mubr.bf16.gmra.mrb[0].mxu0 %v152
    %v219 = vpop.f32.mrb[0].mxu0
    %v220 = vadd.f32 %v101, %v219
    %v221 = vpop.f32.mrb[0].mxu0
    %v222 = vpop.f32.mrb[0].mxu0
    %v223 = vadd.f32 %v101, %v222
    %v224 = vpop.f32.mrb[0].mxu0
    %225 = vmatprep.mubr.bf16.mxu0 0
    %226 = vmatmul.mubr.bf16.gmra.mrb[0].mxu0 %v155
    %v227 = vpop.f32.mrb[0].mxu0
    %v228 = vadd.f32 %v101, %v227
    %v229 = vpop.f32.mrb[0].mxu0
    %v230 = vpop.f32.mrb[0].mxu0
    %v231 = vpop.f32.mrb[0].mxu0
    %232 = vdwg.mxu0
    %v233 = vmax.f32 %v196, 0.0
    %v234 = vmax.f32 %v199, 0.0
    %v235 = vmax.f32 %v204, 0.0
    %v236 = vmax.f32 %v207, 0.0
    %v237 = vmax.f32 %v212, 0.0
    %v238 = vmax.f32 %v215, 0.0
    %v239 = vmax.f32 %v220, 0.0
    %v240 = vmax.f32 %v223, 0.0
    %v241 = vmax.f32 %v228, 0.0
    %vm242 = vcmask 261120
    %v243 = vsel %vm242, %v233, 0.0
    %v244 = vsel %vm242, %v234, 0.0
    %v245 = vadd.f32 %v243, %v244
    %v246 = vsel %vm242, %v235, 0.0
    %v247 = vadd.f32 %v245, %v246
    %v248 = vsel %vm242, %v236, 0.0
    %v249 = vadd.f32 %v247, %v248
    %vm250 = vcmask 257024
    %v251 = vsel %vm250, %v237, 0.0
    %v252 = vadd.f32 %v249, %v251
    %v253 = vrot.slane %v252, 4
    %v254 = vadd.f32 %v252, %v253
    %v255 = vrot.slane %v254, 2
    %v256 = vadd.f32 %v254, %v255
    %v257 = vrot.slane %v256, 1
    %v258 = vadd.f32 %v256, %v257
    %v259 = vmul.f32 %v258, 0.027777778
    %vm260 = vcmask 253952
    %261 = vst.msk [vmem:[#allocation2] sm:$0x1] %vm260, %v259
    %v262 = vsel %vm242, %v233, -inf
    %v263 = vsel %vm242, %v234, -inf
    %v264 = vsel %vm242, %v235, -inf
    %v265 = vsel %vm242, %v236, -inf
    %v266 = vsel %vm250, %v237, -inf
    %v267 = vmax.f32 %v262, %v266
    %v268 = vmax.f32 %v267, %v263
    %v269 = vmax.f32 %v264, %v265
    %v270 = vmax.f32 %v268, %v269
    %v271 = vrot.slane %v270, 4
    %v272 = vmax.f32 %v270, %v271
    %v273 = vrot.slane %v272, 2
    %v274 = vmax.f32 %v272, %v273
    %v275 = vrot.slane %v274, 1
    %v276 = vmax.f32 %v274, %v275
    %277 = vst.msk [vmem:[#allocation3] sm:$0x1] %vm260, %v276
    %vm283 = vcmask 1043456
    %v284 = vrot.slane %v237, 4
    %v285 = vrot.slane %v238, 4
    %v286 = vsel %vm283, %v284, %v285
    %v287 = vrot.slane %v239, 4
    %v288 = vsel %vm283, %v285, %v287
    %v289 = vrot.slane %v240, 4
    %v290 = vsel %vm283, %v287, %v289
    %v291 = vrot.slane %v241, 4
    %v292 = vsel %vm283, %v289, %v291
    %v298 = vsel %vm242, %v286, 0.0
    %v299 = vsel %vm242, %v288, 0.0
    %v300 = vadd.f32 %v298, %v299
    %v301 = vsel %vm242, %v290, 0.0
    %v302 = vadd.f32 %v300, %v301
    %v303 = vsel %vm242, %v292, 0.0
    %v304 = vadd.f32 %v302, %v303
    %v305 = vsel %vm250, %v291, 0.0
    %v306 = vadd.f32 %v304, %v305
    %v307 = vrot.slane %v306, 4
    %v308 = vadd.f32 %v306, %v307
    %v309 = vrot.slane %v308, 2
    %v310 = vadd.f32 %v308, %v309
    %v311 = vrot.slane %v310, 1
    %v312 = vadd.f32 %v310, %v311
    %v313 = vmul.f32 %v312, 0.027777778
    %314 = vst.msk [vmem:[#allocation2 + $0x1] sm:$0x1] %vm260, %v313
    %vm315 = vcmask 261124
    %v316 = vsel %vm315, %v237, -inf
    %v317 = vsel %vm242, %v238, -inf
    %v318 = vsel %vm242, %v239, -inf
    %v319 = vsel %vm242, %v240, -inf
    %v320 = vsel %vm242, %v241, -inf
    %v321 = vmax.f32 %v316, %v320
    %v322 = vmax.f32 %v321, %v317
    %v323 = vmax.f32 %v318, %v319
    %v324 = vmax.f32 %v322, %v323
    %v325 = vrot.slane %v324, 4
    %v326 = vmax.f32 %v324, %v325
    %v327 = vrot.slane %v326, 2
    %v328 = vmax.f32 %v326, %v327
    %v329 = vrot.slane %v328, 1
    %v330 = vmax.f32 %v328, %v329
    %331 = vst.msk [vmem:[#allocation3 + $0x1] sm:$0x1] %vm260, %v330
    %v332 = vld [vmem:[#allocation2] sm:$0x3]
    %v333 = vpack.c.bf16 %v332, %v332
    %v334 = vld [vmem:[%s3] sm:$0xf]
    %v335 = vld [vmem:[%s3 + $0x4] sm:$0xf]
    %v336 = vld [vmem:[%s3 + $0x8] sm:$0xf]
    %v337 = vld [vmem:[%s3 + $0xc] sm:$0xf]
    %v338 = vld [vmem:[#allocation3] sm:$0x3]
    %v339 = vpack.c.bf16 %v338, %v338
    %v340 = vld [vmem:[%s4] sm:$0xf]
    %v341 = vld [vmem:[%s4 + $0x4] sm:$0xf]
    %v342 = vld [vmem:[%s4 + $0x8] sm:$0xf]
    %v343 = vld [vmem:[%s4 + $0xc] sm:$0xf]
    %v348 = vunpack.c.l.b16 %v340
    %v349 = vunpack.c.l.b16 %v341
    %v350 = vunpack.c.l.b16 %v342
    %v351 = vunpack.c.l.b16 %v343
    %v352 = vpack.c.b16 %v349, %v348
    %v353 = vpack.c.b16 %v351, %v350
    %v357 = vsel %vm242, %v339, 0
    %359 = vmatprep.subr.bf16.mxu0 0
    %360 = vmatpush1.bf16.msra.mxu0 %v352
    %361 = vmatprep.subr.bf16.mxu0 0
    %362 = vmatpush1.bf16.msra.mxu0 %v353
    %363 = vmatprep.subr.bf16.mxu0 0
    %364 = vmatpush1.bf16.msra.mxu0 0
    %365 = vmatprep.subr.bf16.mxu0 0
    %366 = vmatpush1.bf16.msra.mxu0 0
    %367 = vmatprep.subr.bf16.mxu0 0
    %368 = vmatpush1.bf16.msra.mxu0 0
    %369 = vmatprep.subr.bf16.mxu0 0
    %370 = vmatpush1.bf16.msra.mxu0 0
    %371 = vmatprep.subr.bf16.mxu0 0
    %372 = vmatpush1.bf16.msra.mxu0 0
    %373 = vmatprep.subr.bf16.mxu0 0
    %374 = vmatpush1.bf16.msra.mxu0 0
    %375 = vmatprep.subr.bf16.mxu0 0
    %376 = vmatpush1.bf16.msra.mxu0 0
    %377 = vmatprep.subr.bf16.mxu0 0
    %378 = vmatpush1.bf16.msra.mxu0 0
    %379 = vmatprep.subr.bf16.mxu0 0
    %380 = vmatpush1.bf16.msra.mxu0 0
    %381 = vmatprep.subr.bf16.mxu0 0
    %382 = vmatpush1.bf16.msra.mxu0 0
    %383 = vmatprep.subr.bf16.mxu0 0
    %384 = vmatpush1.bf16.msra.mxu0 0
    %385 = vmatprep.subr.bf16.mxu0 0
    %386 = vmatpush1.bf16.msra.mxu0 0
    %387 = vmatprep.subr.bf16.mxu0 0
    %388 = vmatpush1.bf16.msra.mxu0 0
    %389 = vmatprep.subr.bf16.mxu0 0
    %390 = vmatpush1.bf16.msra.mxu0 0
    %391 = vmatprep.mubr.bf16.mxu0 0
    %392 = vmatmul.mubr.bf16.gmra.mrb[0].mxu0 %v357
    %v393 = vpop.f32.mrb[0].mxu0
    %v394 = vadd.f32 0.0, %v393
    %v395 = vpop.f32.mrb[0].mxu0
    %v396 = vpop.f32.mrb[0].mxu0
    %v397 = vpop.f32.mrb[0].mxu0
    %398 = vdwg.mxu0
    %v403 = vunpack.c.l.b16 %v334
    %v404 = vunpack.c.l.b16 %v335
    %v405 = vunpack.c.l.b16 %v336
    %v406 = vunpack.c.l.b16 %v337
    %v407 = vpack.c.b16 %v404, %v403
    %v408 = vpack.c.b16 %v406, %v405
    %v412 = vsel %vm242, %v333, 0
    %414 = vmatprep.subr.bf16.mxu0 0
    %415 = vmatpush1.bf16.msra.mxu0 %v407
    %416 = vmatprep.subr.bf16.mxu0 0
    %417 = vmatpush1.bf16.msra.mxu0 %v408
    %418 = vmatprep.subr.bf16.mxu0 0
    %419 = vmatpush1.bf16.msra.mxu0 0
    %420 = vmatprep.subr.bf16.mxu0 0
    %421 = vmatpush1.bf16.msra.mxu0 0
    %422 = vmatprep.subr.bf16.mxu0 0
    %423 = vmatpush1.bf16.msra.mxu0 0
    %424 = vmatprep.subr.bf16.mxu0 0
    %425 = vmatpush1.bf16.msra.mxu0 0
    %426 = vmatprep.subr.bf16.mxu0 0
    %427 = vmatpush1.bf16.msra.mxu0 0
    %428 = vmatprep.subr.bf16.mxu0 0
    %429 = vmatpush1.bf16.msra.mxu0 0
    %430 = vmatprep.subr.bf16.mxu0 0
    %431 = vmatpush1.bf16.msra.mxu0 0
    %432 = vmatprep.subr.bf16.mxu0 0
    %433 = vmatpush1.bf16.msra.mxu0 0
    %434 = vmatprep.subr.bf16.mxu0 0
    %435 = vmatpush1.bf16.msra.mxu0 0
    %436 = vmatprep.subr.bf16.mxu0 0
    %437 = vmatpush1.bf16.msra.mxu0 0
    %438 = vmatprep.subr.bf16.mxu0 0
    %439 = vmatpush1.bf16.msra.mxu0 0
    %440 = vmatprep.subr.bf16.mxu0 0
    %441 = vmatpush1.bf16.msra.mxu0 0
    %442 = vmatprep.subr.bf16.mxu0 0
    %443 = vmatpush1.bf16.msra.mxu0 0
    %444 = vmatprep.subr.bf16.mxu0 0
    %445 = vmatpush1.bf16.msra.mxu0 0
    %446 = vmatprep.mubr.bf16.mxu0 0
    %447 = vmatmul.mubr.bf16.gmra.mrb[0].mxu0 %v412
    %v448 = vpop.f32.mrb[0].mxu0
    %v449 = vadd.f32 %v394, %v448
    %v450 = vpop.f32.mrb[0].mxu0
    %v451 = vpop.f32.mrb[0].mxu0
    %v452 = vpop.f32.mrb[0].mxu0
    %453 = vdwg.mxu0
    %v454 = vld [vmem:[%s5] sm:$0x1]
    %v456 = vlaneseq
    %v457 = vshrl.u32 %v456, 7
    %v458 = vsub.s32 0, %v457
    %v459 = vrot.slane %v454, %v458
    %v461 = vadd.f32 %v449, %v459
    %vm462 = vcmask 123904
    %v463 = vsel %vm462, %v461, -inf
    %464 = vmax.xlane.f32.xlu0 %v463
    %v465 = vpop.xlane.xlu0 %464
    %v466 = vsub.f32 %v461, %v465
    %v467 = vmul.f32 %v466, 1.442695
    %v468 = vpow.pop %v467
    %v469 = vsel %vm462, %v468, 0.0
    %470 = vadd.xlane.f32.xlu0 %v469
    %v471 = vpop.xlane.xlu0 %470
    %v472 = vlog2.pop %v471
    %v473 = vmul.f32 %v472, 0.6931472
    %v474 = vsub.f32 %v466, %v473
    %475 = vst.msk [vmem:[#allocation4] sm:$0x3] %vm462, %v474
    // Predicated region
    $region26: #{tpu_custom_call.1} parent=1 // pred_check
      _
    $region27: #{tpu_custom_call.1} parent=1 // pred_check_branch
      %477 = sbr.rel (0) target = $region29
    $region28: #{tpu_custom_call.1} parent=1 // pred_region
      %s479 = ssub.s32 32, 32
      %480 = vsyncadd [#allocation5], %s479
      %s482 = sshll.u32 [#allocation4], 4
      %s483 = int_to_ptr.vmem [resolvable:$true] %s482
      %485 = dma.vmem_to_hbm [thread:$0]  %s483, 32, %s6, [#allocation5]
    $region29: #{tpu_custom_call.1} parent=1 // pred_fallthru
      _
    // Predicated region
    $region30: #{tpu_custom_call.1} parent=1 // pred_check
      _
    $region31: #{tpu_custom_call.1} parent=1 // pred_check_branch
      %487 = sbr.rel (0) target = $region33
    $region32: #{tpu_custom_call.1} parent=1 // pred_region
      %488 = dma.done [#allocation5], 32
    $region33: #{tpu_custom_call.1} parent=1 // pred_fallthru
      _
    %489 = vsyncpa [#allocation5], 1

</llo_original>
